<compile_context>
chip_gen: v7x
topology: tpu7x:2x2x1
jax: 0.10.0
libtpu: 0.0.40
codegen_flags: <defaults>
</compile_context>

<pallas_src>
import jax
import jax.numpy as jnp
from jax.experimental import pallas as pl
from jax.experimental.pallas import tpu as pltpu


def _round_up(n, m):
    return ((n + m - 1) // m) * m


def _cdiv(a, b):
    return -(-a // b)


def _surrogate_kernel(x_ref, u_ref, w1x_ref, w1u_ref, b1_ref, w2_ref,
                      b2_ref, o_ref):
    cdt = w1x_ref.dtype                      # MXU operand dtype (bf16 or f32)
    x = x_ref[...]                           # (tile_b, S) f32 — reused for residual

    # Hidden layer: cat([x, u], -1) @ w1 == x @ w1[:S] + u @ w1[S:]
    h = jnp.dot(x.astype(cdt), w1x_ref[...],
                preferred_element_type=jnp.float32)
    h = h + jnp.dot(u_ref[...].astype(cdt), w1u_ref[...],
                    preferred_element_type=jnp.float32)
    h = jnp.maximum(h + b1_ref[...], 0.0)    # (tile_b, H) f32

    # Output layer + residual (elementwise path stays f32).
    y = jnp.dot(h.astype(cdt), w2_ref[...],
                preferred_element_type=jnp.float32)
    o_ref[...] = (y + b2_ref[...] + x).astype(o_ref.dtype)


def surrogate_dynamic_model(x, u, w1, b1, w2, b2, *, tile_b=2048,
                            use_bf16=True):
    """next_state = ReLU(cat([x, u], -1) @ w1 + b1) @ w2 + b2 + x."""
    B, S = x.shape
    _, C = u.shape
    H = w1.shape[1]
    assert w1.shape == (S + C, H)
    assert w2.shape == (H, S)
    assert b1.shape == (H,)
    assert b2.shape == (S,)

    # Tiling: batch on the sublane axis.  Pad B only to sublane granularity (8)
    # and pick a tile that divides the padded batch -> < 8 wasted rows / tile.
    # (For v7x, pass tile_b ~ 4096-8192; grid >= 2 then happens naturally for
    #  any batch large enough to benefit from both TensorCores.)
    B_pad8 = _round_up(max(B, 1), 8)
    n_tiles = max(1, _cdiv(B_pad8, max(tile_b, 8)))
    tile_b_eff = _round_up(_cdiv(B_pad8, n_tiles), 8)
    B_pad = n_tiles * tile_b_eff

    if B_pad != B:
        x_in = jnp.pad(x, ((0, B_pad - B), (0, 0)))
        u_in = jnp.pad(u, ((0, B_pad - B), (0, 0)))
    else:
        x_in, u_in = x, u

    # Weights are tiny: split w1 (no HBM concat of [x|u]) and pre-cast for MXU.
    op_dtype = jnp.bfloat16 if use_bf16 else x.dtype
    w1x = w1[:S].astype(op_dtype)                       # (S, H)
    w1u = w1[S:].astype(op_dtype)                       # (C, H)
    w2c = w2.astype(op_dtype)                           # (H, S)
    b1c = b1.reshape(1, H).astype(jnp.float32)          # (1, H)
    b2c = b2.reshape(1, S).astype(jnp.float32)          # (1, S)

    itemsize = lambda a: jnp.dtype(a.dtype).itemsize
    cost = pl.CostEstimate(
        flops=2 * B_pad * ((S + C) * H + H * S),
        transcendentals=0,
        bytes_accessed=(x_in.size * itemsize(x_in)
                        + u_in.size * itemsize(u_in)
                        + B_pad * S * itemsize(x)            # output
                        + (w1x.size + w1u.size + w2c.size) * itemsize(w1x)
                        + (b1c.size + b2c.size) * 4),
    )

    out = pl.pallas_call(
        _surrogate_kernel,
        out_shape=jax.ShapeDtypeStruct((B_pad, S), x.dtype),
        grid=(n_tiles,),
        in_specs=[
            pl.BlockSpec((tile_b_eff, S), lambda i: (i, 0)),  # x   (batch tile)
            pl.BlockSpec((tile_b_eff, C), lambda i: (i, 0)),  # u   (batch tile)
            pl.BlockSpec((S, H), lambda i: (0, 0)),           # w1[:S]  resident
            pl.BlockSpec((C, H), lambda i: (0, 0)),           # w1[S:]  resident
            pl.BlockSpec((1, H), lambda i: (0, 0)),           # b1      resident
            pl.BlockSpec((H, S), lambda i: (0, 0)),           # w2      resident
            pl.BlockSpec((1, S), lambda i: (0, 0)),           # b2      resident
        ],
        out_specs=pl.BlockSpec((tile_b_eff, S), lambda i: (i, 0)),
        compiler_params=pltpu.CompilerParams(
            dimension_semantics=("parallel",)),
        cost_estimate=cost,
    )(x_in, u_in, w1x, w1u, b1c, w2c, b2c)

    return out if B_pad == B else out[:B]


def _reference(x, u, w1, b1, w2, b2):
    xu = jnp.concatenate([x, u], axis=-1)
    h = jnp.maximum(xu @ w1 + b1, 0.0)
    return h @ w2 + b2 + x


if __name__ == "__main__":
    # Small shapes consistent with the module's forward:
    #   batch B=8, state dim S=32, control dim C=32, hidden H=64.
    B, S, C, H = 8, 32, 32, 64

    key = jax.random.PRNGKey(0)
    kx, ku, kw1, kb1, kw2, kb2 = jax.random.split(key, 6)

    x = jax.random.normal(kx, (B, S), dtype=jnp.float32)
    u = jax.random.normal(ku, (B, C), dtype=jnp.float32)

    # Deterministic parameter init (uniform like torch.nn.Linear default).
    lim1 = 1.0 / jnp.sqrt(S + C)
    lim2 = 1.0 / jnp.sqrt(H)
    w1 = jax.random.uniform(kw1, (S + C, H), jnp.float32, -lim1, lim1)
    b1 = jax.random.uniform(kb1, (H,), jnp.float32, -lim1, lim1)
    w2 = jax.random.uniform(kw2, (H, S), jnp.float32, -lim2, lim2)
    b2 = jax.random.uniform(kb2, (S,), jnp.float32, -lim2, lim2)

    out = surrogate_dynamic_model(x, u, w1, b1, w2, b2)
    out = jax.block_until_ready(out)

    ref = _reference(x, u, w1, b1, w2, b2)
    assert out.shape == (B, S)
    # bf16 MXU operands with f32 accumulation -> bf16-level tolerance.
    # For long autoregressive rollouts where residual-chain precision matters,
    # call with use_bf16=False (pure f32 path).
    assert jnp.allclose(out, ref, atol=1e-2, rtol=1e-2), "mismatch vs reference"

    print("KERNEL_OK")
</pallas_src>

<mosaic_0001>
module attributes {stable_mosaic.version = 11 : i64} {
  func.func @_surrogate_kernel(%arg0: i32, %arg1: memref<8x32xf32, #tpu.memory_space<vmem>>, %arg2: memref<8x32xf32, #tpu.memory_space<vmem>>, %arg3: memref<32x64xbf16, #tpu.memory_space<vmem>>, %arg4: memref<32x64xbf16, #tpu.memory_space<vmem>>, %arg5: memref<1x64xf32, #tpu.memory_space<vmem>>, %arg6: memref<64x32xbf16, #tpu.memory_space<vmem>>, %arg7: memref<1x32xf32, #tpu.memory_space<vmem>>, %arg8: memref<8x32xf32, #tpu.memory_space<vmem>>) attributes {dimension_semantics = [#tpu.dimension_semantics<parallel>], iteration_bounds = array<i64: 1>, scalar_prefetch = 0 : i64, scratch_operands = 0 : i64, tpu.core_type = #tpu.core_type<tc>, window_params = [{transform_indices = @transform_0, window_bounds = array<i64: 8, 32>}, {transform_indices = @transform_1, window_bounds = array<i64: 8, 32>}, {pipeline_mode = #tpu.pipeline_mode<synchronous>, transform_indices = @transform_2, window_bounds = array<i64: 32, 64>}, {pipeline_mode = #tpu.pipeline_mode<synchronous>, transform_indices = @transform_3, window_bounds = array<i64: 32, 64>}, {pipeline_mode = #tpu.pipeline_mode<synchronous>, transform_indices = @transform_4, window_bounds = array<i64: 1, 64>}, {pipeline_mode = #tpu.pipeline_mode<synchronous>, transform_indices = @transform_5, window_bounds = array<i64: 64, 32>}, {pipeline_mode = #tpu.pipeline_mode<synchronous>, transform_indices = @transform_6, window_bounds = array<i64: 1, 32>}, {transform_indices = @transform_7, window_bounds = array<i64: 8, 32>}]} {
    %c0 = arith.constant 0 : index
    %c0_0 = arith.constant 0 : index
    %0 = vector.load %arg1[%c0, %c0_0] : memref<8x32xf32, #tpu.memory_space<vmem>>, vector<8x32xf32>
    %1 = arith.truncf %0 : vector<8x32xf32> to vector<8x32xbf16>
    %c0_1 = arith.constant 0 : index
    %c0_2 = arith.constant 0 : index
    %2 = vector.load %arg3[%c0_1, %c0_2] : memref<32x64xbf16, #tpu.memory_space<vmem>>, vector<32x64xbf16>
    %cst = arith.constant dense<0.000000e+00> : vector<8x64xf32>
    %3 = tpu.matmul %1, %2, %cst {dimension_numbers = #tpu.dot_dimension_numbers<[1], [0], [0], [1], [0, 0, 1, 1], [], []>} : vector<8x32xbf16>, vector<32x64xbf16>, vector<8x64xf32> -> vector<8x64xf32>
    %c0_3 = arith.constant 0 : index
    %c0_4 = arith.constant 0 : index
    %4 = vector.load %arg2[%c0_3, %c0_4] : memref<8x32xf32, #tpu.memory_space<vmem>>, vector<8x32xf32>
    %5 = arith.truncf %4 : vector<8x32xf32> to vector<8x32xbf16>
    %c0_5 = arith.constant 0 : index
    %c0_6 = arith.constant 0 : index
    %6 = vector.load %arg4[%c0_5, %c0_6] : memref<32x64xbf16, #tpu.memory_space<vmem>>, vector<32x64xbf16>
    %cst_7 = arith.constant dense<0.000000e+00> : vector<8x64xf32>
    %7 = tpu.matmul %5, %6, %cst_7 {dimension_numbers = #tpu.dot_dimension_numbers<[1], [0], [0], [1], [0, 0, 1, 1], [], []>} : vector<8x32xbf16>, vector<32x64xbf16>, vector<8x64xf32> -> vector<8x64xf32>
    %8 = arith.addf %3, %7 : vector<8x64xf32>
    %c0_8 = arith.constant 0 : index
    %c0_9 = arith.constant 0 : index
    %9 = vector.load %arg5[%c0_8, %c0_9] : memref<1x64xf32, #tpu.memory_space<vmem>>, vector<1x64xf32>
    %10 = vector.broadcast %9 : vector<1x64xf32> to vector<8x64xf32>
    %11 = arith.addf %8, %10 : vector<8x64xf32>
    %cst_10 = arith.constant 0.000000e+00 : f32
    %12 = vector.broadcast %cst_10 : f32 to vector<8x64xf32>
    %13 = arith.maximumf %11, %12 : vector<8x64xf32>
    %14 = arith.truncf %13 : vector<8x64xf32> to vector<8x64xbf16>
    %c0_11 = arith.constant 0 : index
    %c0_12 = arith.constant 0 : index
    %15 = vector.load %arg6[%c0_11, %c0_12] : memref<64x32xbf16, #tpu.memory_space<vmem>>, vector<64x32xbf16>
    %cst_13 = arith.constant dense<0.000000e+00> : vector<8x32xf32>
    %16 = tpu.matmul %14, %15, %cst_13 {dimension_numbers = #tpu.dot_dimension_numbers<[1], [0], [0], [1], [0, 0, 1, 1], [], []>} : vector<8x64xbf16>, vector<64x32xbf16>, vector<8x32xf32> -> vector<8x32xf32>
    %c0_14 = arith.constant 0 : index
    %c0_15 = arith.constant 0 : index
    %17 = vector.load %arg7[%c0_14, %c0_15] : memref<1x32xf32, #tpu.memory_space<vmem>>, vector<1x32xf32>
    %18 = vector.broadcast %17 : vector<1x32xf32> to vector<8x32xf32>
    %19 = arith.addf %16, %18 : vector<8x32xf32>
    %20 = arith.addf %19, %0 : vector<8x32xf32>
    %c0_16 = arith.constant 0 : index
    %c0_17 = arith.constant 0 : index
    %21 = vector.load %arg8[%c0_16, %c0_17] : memref<8x32xf32, #tpu.memory_space<vmem>>, vector<8x32xf32>
    tpu.vector_store %arg8[%c0_16, %c0_17], %20 {strides = array<i32>} : memref<8x32xf32, #tpu.memory_space<vmem>>, vector<8x32xf32>,
    return
  }
  func.func @transform_0(%arg0: i32) -> (i32, i32) {
    %c0_i32 = arith.constant 0 : i32
    %c0_i32_0 = arith.constant 0 : i32
    return %arg0, %c0_i32 : i32, i32
  }
  func.func @transform_1(%arg0: i32) -> (i32, i32) {
    %c0_i32 = arith.constant 0 : i32
    %c0_i32_0 = arith.constant 0 : i32
    return %arg0, %c0_i32 : i32, i32
  }
  func.func @transform_2(%arg0: i32) -> (i32, i32) {
    %c0_i32 = arith.constant 0 : i32
    %c0_i32_0 = arith.constant 0 : i32
    %c0_i32_1 = arith.constant 0 : i32
    return %c0_i32, %c0_i32_0 : i32, i32
  }
  func.func @transform_3(%arg0: i32) -> (i32, i32) {
    %c0_i32 = arith.constant 0 : i32
    %c0_i32_0 = arith.constant 0 : i32
    %c0_i32_1 = arith.constant 0 : i32
    return %c0_i32, %c0_i32_0 : i32, i32
  }
  func.func @transform_4(%arg0: i32) -> (i32, i32) {
    %c0_i32 = arith.constant 0 : i32
    %c0_i32_0 = arith.constant 0 : i32
    %c0_i32_1 = arith.constant 0 : i32
    return %c0_i32, %c0_i32_0 : i32, i32
  }
  func.func @transform_5(%arg0: i32) -> (i32, i32) {
    %c0_i32 = arith.constant 0 : i32
    %c0_i32_0 = arith.constant 0 : i32
    %c0_i32_1 = arith.constant 0 : i32
    return %c0_i32, %c0_i32_0 : i32, i32
  }
  func.func @transform_6(%arg0: i32) -> (i32, i32) {
    %c0_i32 = arith.constant 0 : i32
    %c0_i32_0 = arith.constant 0 : i32
    %c0_i32_1 = arith.constant 0 : i32
    return %c0_i32, %c0_i32_0 : i32, i32
  }
  func.func @transform_7(%arg0: i32) -> (i32, i32) {
    %c0_i32 = arith.constant 0 : i32
    %c0_i32_0 = arith.constant 0 : i32
    return %arg0, %c0_i32 : i32, i32
  }
}

</mosaic_0001>

<llo_original>
// kernel: tpu_custom_call.1
$region0: #{tpu_custom_call.1}
  #allocation0 [shape = 'u32[]', space=smem, size = 0x4, offset = 0x4, fixed_abs, tag = 'smem constant byte address 0x4 - core index']
  #allocation1 [shape = 'u32[144,128]{1,0:T(1,128)}', space=vmem, size = 0x12000, scoped, tag = 'internal scratch']
  %s0 = inlined_call_operand.vmem [shape: f32[8,32], index: 0, kind: input, shape index: {}]
  %s1 = inlined_call_operand.vmem [shape: f32[8,32], index: 1, kind: input, shape index: {}]
  %s2 = inlined_call_operand.vmem [shape: bf16[32,64], index: 2, kind: input, shape index: {}]
  %s3 = inlined_call_operand.vmem [shape: bf16[32,64], index: 3, kind: input, shape index: {}]
  %s4 = inlined_call_operand.vmem [shape: f32[1,64], index: 4, kind: input, shape index: {}]
  %s5 = inlined_call_operand.vmem [shape: bf16[64,32], index: 5, kind: input, shape index: {}]
  %s6 = inlined_call_operand.vmem [shape: f32[1,32], index: 6, kind: input, shape index: {}]
  %s7 = inlined_call_operand.hbm [shape: f32[8,32], index: 7, kind: output, shape index: {}]
  %s8 = sld [smem:[#allocation0]]
  $region38: #{tpu_custom_call.1} parent=0
    _
  %s10 = ssub.s32 1, %s8
  %s11 = scalar_select 0, %s10, %s8
  $region1: #{tpu_custom_call.1} parent=0
    #allocation2 [shape = 'u8[4096]{0}', space=vmem, size = 0x1000, scoped, tag = 'output window, operand 0, single buffered']
    #allocation3 [shape = 's32[1]{0}', space=sflag, size = 0x4, scoped, tag = 'scoped memory for tpu_custom_call.1']
    %12 = vsyncpa [#allocation3], 0
    // Predicated region
    $region2: #{tpu_custom_call.1} parent=1 // pred_check
      _
    $region3: #{tpu_custom_call.1} parent=1 // pred_check_branch
      %14 = sbr.rel (0) target = $region5
    $region4: #{tpu_custom_call.1} parent=1 // pred_region
      _
    $region5: #{tpu_custom_call.1} parent=1 // pred_fallthru
      _
    // Predicated region
    $region6: #{tpu_custom_call.1} parent=1 // pred_check
      _
    $region7: #{tpu_custom_call.1} parent=1 // pred_check_branch
      %16 = sbr.rel (0) target = $region9
    $region8: #{tpu_custom_call.1} parent=1 // pred_region
      _
    $region9: #{tpu_custom_call.1} parent=1 // pred_fallthru
      _
    // Predicated region
    $region10: #{tpu_custom_call.1} parent=1 // pred_check
      _
    $region11: #{tpu_custom_call.1} parent=1 // pred_check_branch
      %18 = sbr.rel (0) target = $region13
    $region12: #{tpu_custom_call.1} parent=1 // pred_region
      _
    $region13: #{tpu_custom_call.1} parent=1 // pred_fallthru
      _
    // Predicated region
    $region14: #{tpu_custom_call.1} parent=1 // pred_check
      _
    $region15: #{tpu_custom_call.1} parent=1 // pred_check_branch
      %20 = sbr.rel (0) target = $region17
    $region16: #{tpu_custom_call.1} parent=1 // pred_region
      _
    $region17: #{tpu_custom_call.1} parent=1 // pred_fallthru
      _
    // Predicated region
    $region18: #{tpu_custom_call.1} parent=1 // pred_check
      _
    $region19: #{tpu_custom_call.1} parent=1 // pred_check_branch
      %22 = sbr.rel (0) target = $region21
    $region20: #{tpu_custom_call.1} parent=1 // pred_region
      _
    $region21: #{tpu_custom_call.1} parent=1 // pred_fallthru
      _
    // Predicated region
    $region22: #{tpu_custom_call.1} parent=1 // pred_check
      _
    $region23: #{tpu_custom_call.1} parent=1 // pred_check_branch
      %24 = sbr.rel (0) target = $region25
    $region24: #{tpu_custom_call.1} parent=1 // pred_region
      _
    $region25: #{tpu_custom_call.1} parent=1 // pred_fallthru
      _
    // Predicated region
    $region26: #{tpu_custom_call.1} parent=1 // pred_check
      _
    $region27: #{tpu_custom_call.1} parent=1 // pred_check_branch
      %26 = sbr.rel (0) target = $region29
    $region28: #{tpu_custom_call.1} parent=1 // pred_region
      _
    $region29: #{tpu_custom_call.1} parent=1 // pred_fallthru
      _
    %v28 = vld [vmem:[%s0] sm:$0xff]
    %v29 = vpack.c.bf16 %v28, %v28
    %v30 = vld [vmem:[%s2] sm:$0xf]
    %v31 = vld [vmem:[%s2 + $0x4] sm:$0xf]
    %v32 = vld [vmem:[%s2 + $0x8] sm:$0xf]
    %v33 = vld [vmem:[%s2 + $0xc] sm:$0xf]
    %v34 = vld [vmem:[%s1] sm:$0xff]
    %v35 = vpack.c.bf16 %v34, %v34
    %v36 = vld [vmem:[%s3] sm:$0xf]
    %v37 = vld [vmem:[%s3 + $0x4] sm:$0xf]
    %v38 = vld [vmem:[%s3 + $0x8] sm:$0xf]
    %v39 = vld [vmem:[%s3 + $0xc] sm:$0xf]
    %v44 = vunpack.c.l.b16 %v36
    %v45 = vunpack.c.l.b16 %v37
    %v46 = vunpack.c.l.b16 %v38
    %v47 = vunpack.c.l.b16 %v39
    %v48 = vpack.c.b16 %v45, %v44
    %v49 = vpack.c.b16 %v47, %v46
    %vm52 = vcmask 261120
    %v54 = vsel %vm52, %v35, 0
    %56 = vmatprep.subr.bf16.mxu0 0
    %57 = vmatpush1.bf16.msra.mxu0 %v48
    %58 = vmatprep.subr.bf16.mxu0 0
    %59 = vmatpush1.bf16.msra.mxu0 %v49
    %60 = vmatprep.subr.bf16.mxu0 0
    %61 = vmatpush1.bf16.msra.mxu0 0
    %62 = vmatprep.subr.bf16.mxu0 0
    %63 = vmatpush1.bf16.msra.mxu0 0
    %64 = vmatprep.subr.bf16.mxu0 0
    %65 = vmatpush1.bf16.msra.mxu0 0
    %66 = vmatprep.subr.bf16.mxu0 0
    %67 = vmatpush1.bf16.msra.mxu0 0
    %68 = vmatprep.subr.bf16.mxu0 0
    %69 = vmatpush1.bf16.msra.mxu0 0
    %70 = vmatprep.subr.bf16.mxu0 0
    %71 = vmatpush1.bf16.msra.mxu0 0
    %72 = vmatprep.subr.bf16.mxu0 0
    %73 = vmatpush1.bf16.msra.mxu0 0
    %74 = vmatprep.subr.bf16.mxu0 0
    %75 = vmatpush1.bf16.msra.mxu0 0
    %76 = vmatprep.subr.bf16.mxu0 0
    %77 = vmatpush1.bf16.msra.mxu0 0
    %78 = vmatprep.subr.bf16.mxu0 0
    %79 = vmatpush1.bf16.msra.mxu0 0
    %80 = vmatprep.subr.bf16.mxu0 0
    %81 = vmatpush1.bf16.msra.mxu0 0
    %82 = vmatprep.subr.bf16.mxu0 0
    %83 = vmatpush1.bf16.msra.mxu0 0
    %84 = vmatprep.subr.bf16.mxu0 0
    %85 = vmatpush1.bf16.msra.mxu0 0
    %86 = vmatprep.subr.bf16.mxu0 0
    %87 = vmatpush1.bf16.msra.mxu0 0
    %88 = vmatprep.mubr.bf16.mxu0 0
    %89 = vmatmul.mubr.bf16.gmra.mrb[0].mxu0 %v54
    %v90 = vpop.f32.mrb[0].mxu0
    %v91 = vadd.f32 0.0, %v90
    %v92 = vpop.f32.mrb[0].mxu0
    %v93 = vpop.f32.mrb[0].mxu0
    %v94 = vpop.f32.mrb[0].mxu0
    %95 = vdwg.mxu0
    %v100 = vunpack.c.l.b16 %v30
    %v101 = vunpack.c.l.b16 %v31
    %v102 = vunpack.c.l.b16 %v32
    %v103 = vunpack.c.l.b16 %v33
    %v104 = vpack.c.b16 %v101, %v100
    %v105 = vpack.c.b16 %v103, %v102
    %v109 = vsel %vm52, %v29, 0
    %111 = vmatprep.subr.bf16.mxu0 0
    %112 = vmatpush1.bf16.msra.mxu0 %v104
    %113 = vmatprep.subr.bf16.mxu0 0
    %114 = vmatpush1.bf16.msra.mxu0 %v105
    %115 = vmatprep.subr.bf16.mxu0 0
    %116 = vmatpush1.bf16.msra.mxu0 0
    %117 = vmatprep.subr.bf16.mxu0 0
    %118 = vmatpush1.bf16.msra.mxu0 0
    %119 = vmatprep.subr.bf16.mxu0 0
    %120 = vmatpush1.bf16.msra.mxu0 0
    %121 = vmatprep.subr.bf16.mxu0 0
    %122 = vmatpush1.bf16.msra.mxu0 0
    %123 = vmatprep.subr.bf16.mxu0 0
    %124 = vmatpush1.bf16.msra.mxu0 0
    %125 = vmatprep.subr.bf16.mxu0 0
    %126 = vmatpush1.bf16.msra.mxu0 0
    %127 = vmatprep.subr.bf16.mxu0 0
    %128 = vmatpush1.bf16.msra.mxu0 0
    %129 = vmatprep.subr.bf16.mxu0 0
    %130 = vmatpush1.bf16.msra.mxu0 0
    %131 = vmatprep.subr.bf16.mxu0 0
    %132 = vmatpush1.bf16.msra.mxu0 0
    %133 = vmatprep.subr.bf16.mxu0 0
    %134 = vmatpush1.bf16.msra.mxu0 0
    %135 = vmatprep.subr.bf16.mxu0 0
    %136 = vmatpush1.bf16.msra.mxu0 0
    %137 = vmatprep.subr.bf16.mxu0 0
    %138 = vmatpush1.bf16.msra.mxu0 0
    %139 = vmatprep.subr.bf16.mxu0 0
    %140 = vmatpush1.bf16.msra.mxu0 0
    %141 = vmatprep.subr.bf16.mxu0 0
    %142 = vmatpush1.bf16.msra.mxu0 0
    %143 = vmatprep.mubr.bf16.mxu0 0
    %144 = vmatmul.mubr.bf16.gmra.mrb[0].mxu0 %v109
    %v145 = vpop.f32.mrb[0].mxu0
    %v146 = vadd.f32 %v91, %v145
    %v147 = vpop.f32.mrb[0].mxu0
    %v148 = vpop.f32.mrb[0].mxu0
    %v149 = vpop.f32.mrb[0].mxu0
    %150 = vdwg.mxu0
    %v151 = vld [vmem:[%s4] sm:$0x1]
    %v153 = vlaneseq
    %v154 = vshrl.u32 %v153, 7
    %v155 = vsub.s32 0, %v154
    %v156 = vrot.slane %v151, %v155
    %v158 = vadd.f32 %v146, %v156
    %v159 = vmax.f32 %v158, 0.0
    %v160 = vpack.c.bf16 %v159, %v159
    %v161 = vld [vmem:[%s5] sm:$0xf]
    %v162 = vld [vmem:[%s5 + $0x4] sm:$0xf]
    %v163 = vld [vmem:[%s5 + $0x8] sm:$0xf]
    %v164 = vld [vmem:[%s5 + $0xc] sm:$0xf]
    %v165 = vld [vmem:[%s5 + $0x10] sm:$0xf]
    %v166 = vld [vmem:[%s5 + $0x14] sm:$0xf]
    %v167 = vld [vmem:[%s5 + $0x18] sm:$0xf]
    %v168 = vld [vmem:[%s5 + $0x1c] sm:$0xf]
    %v169 = vld [vmem:[%s6] sm:$0x1]
    %v171 = vlaneseq
    %v172 = vshrl.u32 %v171, 7
    %v173 = vsub.s32 0, %v172
    %v174 = vrot.slane %v169, %v173
    %v184 = vunpack.c.l.b16 %v161
    %v185 = vunpack.c.l.b16 %v162
    %v186 = vunpack.c.l.b16 %v163
    %v187 = vunpack.c.l.b16 %v164
    %v188 = vunpack.c.l.b16 %v165
    %v189 = vunpack.c.l.b16 %v166
    %v190 = vunpack.c.l.b16 %v167
    %v191 = vunpack.c.l.b16 %v168
    %v192 = vpack.c.b16 %v185, %v184
    %v193 = vpack.c.b16 %v187, %v186
    %v194 = vpack.c.b16 %v189, %v188
    %v195 = vpack.c.b16 %v191, %v190
    %vm200 = vcmask 523264
    %v202 = vsel %vm200, %v160, 0
    %204 = vmatprep.subr.bf16.mxu0 0
    %205 = vmatpush1.bf16.msra.mxu0 %v192
    %206 = vmatprep.subr.bf16.mxu0 0
    %207 = vmatpush1.bf16.msra.mxu0 %v193
    %208 = vmatprep.subr.bf16.mxu0 0
    %209 = vmatpush1.bf16.msra.mxu0 %v194
    %210 = vmatprep.subr.bf16.mxu0 0
    %211 = vmatpush1.bf16.msra.mxu0 %v195
    %212 = vmatprep.subr.bf16.mxu0 0
    %213 = vmatpush1.bf16.msra.mxu0 0
    %214 = vmatprep.subr.bf16.mxu0 0
    %215 = vmatpush1.bf16.msra.mxu0 0
    %216 = vmatprep.subr.bf16.mxu0 0
    %217 = vmatpush1.bf16.msra.mxu0 0
    %218 = vmatprep.subr.bf16.mxu0 0
    %219 = vmatpush1.bf16.msra.mxu0 0
    %220 = vmatprep.subr.bf16.mxu0 0
    %221 = vmatpush1.bf16.msra.mxu0 0
    %222 = vmatprep.subr.bf16.mxu0 0
    %223 = vmatpush1.bf16.msra.mxu0 0
    %224 = vmatprep.subr.bf16.mxu0 0
    %225 = vmatpush1.bf16.msra.mxu0 0
    %226 = vmatprep.subr.bf16.mxu0 0
    %227 = vmatpush1.bf16.msra.mxu0 0
    %228 = vmatprep.subr.bf16.mxu0 0
    %229 = vmatpush1.bf16.msra.mxu0 0
    %230 = vmatprep.subr.bf16.mxu0 0
    %231 = vmatpush1.bf16.msra.mxu0 0
    %232 = vmatprep.subr.bf16.mxu0 0
    %233 = vmatpush1.bf16.msra.mxu0 0
    %234 = vmatprep.subr.bf16.mxu0 0
    %235 = vmatpush1.bf16.msra.mxu0 0
    %236 = vmatprep.mubr.bf16.mxu0 0
    %237 = vmatmul.mubr.bf16.gmra.mrb[0].mxu0 %v202
    %v238 = vpop.f32.mrb[0].mxu0
    %v239 = vadd.f32 %v174, %v238
    %v240 = vpop.f32.mrb[0].mxu0
    %v241 = vpop.f32.mrb[0].mxu0
    %v242 = vpop.f32.mrb[0].mxu0
    %243 = vdwg.mxu0
    %v244 = vadd.f32 %v239, %v28
    %245 = vst.msk [vmem:[#allocation2] sm:$0xff] %vm52, %v244
    // Predicated region
    $region30: #{tpu_custom_call.1} parent=1 // pred_check
      _
    $region31: #{tpu_custom_call.1} parent=1 // pred_check_branch
      %247 = sbr.rel (0) target = $region33
    $region32: #{tpu_custom_call.1} parent=1 // pred_region
      %s249 = ssub.s32 128, 128
      %250 = vsyncadd [#allocation3], %s249
      %s252 = sshll.u32 [#allocation2], 4
      %s253 = int_to_ptr.vmem [resolvable:$true] %s252
      %255 = dma.vmem_to_hbm [thread:$0]  %s253, 128, %s7, [#allocation3]
    $region33: #{tpu_custom_call.1} parent=1 // pred_fallthru
      _
    // Predicated region
    $region34: #{tpu_custom_call.1} parent=1 // pred_check
      _
    $region35: #{tpu_custom_call.1} parent=1 // pred_check_branch
      %257 = sbr.rel (0) target = $region37
    $region36: #{tpu_custom_call.1} parent=1 // pred_region
      %258 = dma.done [#allocation3], 128
    $region37: #{tpu_custom_call.1} parent=1 // pred_fallthru
      _
    %259 = vsyncpa [#allocation3], 1

</llo_original>
